<compile_context>
chip_gen: v7x
topology: tpu7x:2x2x1
jax: 0.10.0
libtpu: 0.0.40
codegen_flags: <defaults>
</compile_context>

<pallas_src>
import functools

import jax
import jax.numpy as jnp
from jax.experimental import pallas as pl
from jax.experimental.pallas import tpu as pltpu


def _round_up(x, m):
    return ((x + m - 1) // m) * m


def _label_smoothing_kernel(x_ref, t_ref, o_ref, acc_picked, acc_uniform, *,
                            epsilon, num_classes, true_batch, padded_batch,
                            block_b):
    i = pl.program_id(0)

    @pl.when(i == 0)
    def _init():
        acc_picked[...] = jnp.zeros_like(acc_picked)
        acc_uniform[...] = jnp.zeros_like(acc_uniform)

    x = x_ref[...].astype(jnp.float32)                     # (TB, C_pad)
    tb, c_pad = x.shape

    class_ids = jax.lax.broadcasted_iota(jnp.int32, (tb, c_pad), 1)

    if num_classes == c_pad:
        # lane-dense class axis: no masking needed
        m = jnp.max(x, axis=1, keepdims=True)              # (TB, 1)
        z = x - m
        lse = jnp.log(jnp.sum(jnp.exp(z), axis=1, keepdims=True))
        sum_z = jnp.sum(z, axis=1, keepdims=True)
    else:
        lane_valid = class_ids < num_classes
        m = jnp.max(jnp.where(lane_valid, x, -jnp.inf), axis=1, keepdims=True)
        z = x - m
        lse = jnp.log(jnp.sum(jnp.where(lane_valid, jnp.exp(z), 0.0),
                              axis=1, keepdims=True))
        sum_z = jnp.sum(jnp.where(lane_valid, z, 0.0), axis=1, keepdims=True)

    # per-row sum over classes of log_probs  (= sum_c z - C * lse)
    uniform_row = sum_z - jnp.float32(num_classes) * lse    # (TB, 1)

    # per-row picked-class log-prob: z[b, t_b] - lse[b]
    picked_z = jnp.sum(jnp.where(class_ids == t_ref[...], z, 0.0),
                       axis=1, keepdims=True)
    picked_row = picked_z - lse                             # (TB, 1)

    if padded_batch != true_batch:
        row_ids = i * block_b + jax.lax.broadcasted_iota(jnp.int32, (tb, 1), 0)
        row_valid = (row_ids < true_batch).astype(jnp.float32)
        picked_row = picked_row * row_valid
        uniform_row = uniform_row * row_valid

    acc_picked[...] += jnp.sum(picked_row).reshape(1, 1)
    acc_uniform[...] += jnp.sum(uniform_row).reshape(1, 1)

    @pl.when(i == pl.num_programs(0) - 1)
    def _finalize():
        loss = -((1.0 - epsilon) * acc_picked[...]
                 + (epsilon / num_classes) * acc_uniform[...]) / true_batch
        o_ref[...] = loss


def label_smoothing_loss(inputs, targets, epsilon=0.1, block_b=None):
    """inputs: (B, C) float logits (f32 or bf16); targets: (B,) int class ids."""
    B, C = inputs.shape
    C_pad = _round_up(max(C, 128), 128)                 # lane-dense class axis
    itemsize = jnp.dtype(inputs.dtype).itemsize

    if block_b is None:
        # keep each double-buffered input block <= ~8 MiB (safe on v5e/v6e/v7x)
        budget = 8 * 1024 * 1024
        block_b = max(8, min(1024, (budget // (2 * C_pad * itemsize)) // 8 * 8))
    block_b = int(min(block_b, _round_up(B, 8)))
    B_pad = _round_up(B, block_b)
    grid_b = B_pad // block_b

    x = inputs
    if (C_pad != C) or (B_pad != B):
        x = jnp.zeros((B_pad, C_pad), dtype=inputs.dtype).at[:B, :C].set(inputs)
    t = jnp.zeros((B_pad, 1), dtype=jnp.int32).at[:B, 0].set(
        targets.astype(jnp.int32))

    kernel = functools.partial(
        _label_smoothing_kernel,
        epsilon=float(epsilon),
        num_classes=C,
        true_batch=B,
        padded_batch=B_pad,
        block_b=block_b,
    )

    out = pl.pallas_call(
        kernel,
        out_shape=jax.ShapeDtypeStruct((1, 1), jnp.float32),
        grid=(grid_b,),
        in_specs=[
            pl.BlockSpec((block_b, C_pad), lambda i: (i, 0)),
            pl.BlockSpec((block_b, 1), lambda i: (i, 0)),
        ],
        out_specs=pl.BlockSpec((1, 1), lambda i: (0, 0)),
        scratch_shapes=[
            pltpu.VMEM((1, 1), jnp.float32),
            pltpu.VMEM((1, 1), jnp.float32),
        ],
        compiler_params=pltpu.CompilerParams(
            dimension_semantics=("arbitrary",)),
    )(x, t)
    return out[0, 0]


def _reference(inputs, targets, epsilon=0.1):
    # pure-JAX reference mirroring the PyTorch module
    log_probs = jax.nn.log_softmax(inputs.astype(jnp.float32), axis=1)
    B, C = inputs.shape
    one_hot = jax.nn.one_hot(targets, C, dtype=jnp.float32)
    tgt = (1.0 - epsilon) * one_hot + epsilon / C
    return jnp.sum(jnp.mean(-tgt * log_probs, axis=0))


if __name__ == "__main__":
    key = jax.random.PRNGKey(0)
    k1, k2, k3, k4 = jax.random.split(key, 4)

    # --- case 1: small f32, lane-padded class axis (8 x 32) ---
    batch, num_classes, epsilon = 8, 32, 0.1
    inputs = jax.random.normal(k1, (batch, num_classes), dtype=jnp.float32)
    targets = jax.random.randint(k2, (batch,), 0, num_classes, dtype=jnp.int32)

    loss = jax.block_until_ready(label_smoothing_loss(inputs, targets, epsilon))
    ref = _reference(inputs, targets, epsilon)
    assert jnp.allclose(loss, ref, atol=1e-5, rtol=1e-5), (loss, ref)

    # --- case 2: bf16 logits, ragged batch tiling (40 x 100, TB=16 -> 3 tiles) ---
    batch2, classes2 = 40, 100
    inputs2 = jax.random.normal(k3, (batch2, classes2), dtype=jnp.float32
                                ).astype(jnp.bfloat16)
    targets2 = jax.random.randint(k4, (batch2,), 0, classes2, dtype=jnp.int32)

    loss2 = jax.block_until_ready(
        label_smoothing_loss(inputs2, targets2, epsilon, block_b=16))
    ref2 = _reference(inputs2, targets2, epsilon)
    assert jnp.allclose(loss2, ref2, atol=1e-3, rtol=1e-3), (loss2, ref2)

    print("KERNEL_OK")
</pallas_src>

<mosaic_0001>
module attributes {stable_mosaic.version = 11 : i64} {
  func.func @_label_smoothing_kernel(%arg0: i32, %arg1: memref<8x128xf32, #tpu.memory_space<vmem>>, %arg2: memref<8x1xi32, #tpu.memory_space<vmem>>, %arg3: memref<1x1xf32, #tpu.memory_space<vmem>>, %arg4: memref<1x1xf32, #tpu.memory_space<vmem>>, %arg5: memref<1x1xf32, #tpu.memory_space<vmem>>) attributes {dimension_semantics = [#tpu.dimension_semantics<arbitrary>], iteration_bounds = array<i64: 1>, scalar_prefetch = 0 : i64, scratch_operands = 2 : i64, tpu.core_type = #tpu.core_type<tc>, window_params = [{transform_indices = @transform_0, window_bounds = array<i64: 8, 128>}, {transform_indices = @transform_1, window_bounds = array<i64: 8, 1>}, {pipeline_mode = #tpu.pipeline_mode<synchronous>, transform_indices = @transform_2, window_bounds = array<i64: 1, 1>}]} {
    %c0_i32 = arith.constant 0 : i32
    %0 = arith.cmpi eq, %arg0, %c0_i32 : i32
    %1 = arith.extui %0 : i1 to i32
    %c0_i32_0 = arith.constant 0 : i32
    %2 = arith.cmpi ne, %1, %c0_i32_0 : i32
    scf.if %2 {
      %cst_24 = arith.constant 0.000000e+00 : f32
      %53 = vector.broadcast %cst_24 : f32 to vector<1x1xf32>
      %c0_25 = arith.constant 0 : index
      %c0_26 = arith.constant 0 : index
      %54 = vector.load %arg4[%c0_25, %c0_26] : memref<1x1xf32, #tpu.memory_space<vmem>>, vector<1x1xf32>
      tpu.vector_store %arg4[%c0_25, %c0_26], %53 {strides = array<i32>} : memref<1x1xf32, #tpu.memory_space<vmem>>, vector<1x1xf32>,
      %cst_27 = arith.constant 0.000000e+00 : f32
      %55 = vector.broadcast %cst_27 : f32 to vector<1x1xf32>
      %c0_28 = arith.constant 0 : index
      %c0_29 = arith.constant 0 : index
      %56 = vector.load %arg5[%c0_28, %c0_29] : memref<1x1xf32, #tpu.memory_space<vmem>>, vector<1x1xf32>
      tpu.vector_store %arg5[%c0_28, %c0_29], %55 {strides = array<i32>} : memref<1x1xf32, #tpu.memory_space<vmem>>, vector<1x1xf32>,
    } else {
    }
    %c0 = arith.constant 0 : index
    %c0_1 = arith.constant 0 : index
    %3 = vector.load %arg1[%c0, %c0_1] : memref<8x128xf32, #tpu.memory_space<vmem>>, vector<8x128xf32>
    %4 = tpu.iota {dimensions = array<i32: 1>} : vector<8x128xi32>
    %c32_i32 = arith.constant 32 : i32
    %5 = vector.broadcast %c32_i32 : i32 to vector<8x128xi32>
    %6 = arith.cmpi slt, %4, %5 : vector<8x128xi32>
    %cst = arith.constant 0xFF800000 : f32
    %7 = vector.broadcast %cst : f32 to vector<8x128xf32>
    %8 = arith.select %6, %3, %7 : vector<8x128xi1>, vector<8x128xf32>
    %cst_2 = arith.constant dense<0xFF800000> : vector<8xf32>
    %9 = vector.multi_reduction <maximumf>, %8, %cst_2 [1] : vector<8x128xf32> to vector<8xf32>
    %10 = vector.shape_cast %9 : vector<8xf32> to vector<8x1xf32>
    %11 = vector.broadcast %10 : vector<8x1xf32> to vector<8x128xf32>
    %12 = arith.subf %3, %11 : vector<8x128xf32>
    %13 = math.exp %12 : vector<8x128xf32>
    %cst_3 = arith.constant 0.000000e+00 : f32
    %14 = vector.broadcast %cst_3 : f32 to vector<8x128xf32>
    %15 = arith.select %6, %13, %14 : vector<8x128xi1>, vector<8x128xf32>
    %cst_4 = arith.constant dense<0.000000e+00> : vector<8xf32>
    %16 = vector.multi_reduction <add>, %15, %cst_4 [1] : vector<8x128xf32> to vector<8xf32>
    %17 = vector.shape_cast %16 : vector<8xf32> to vector<8x1xf32>
    %18 = math.log %17 : vector<8x1xf32>
    %cst_5 = arith.constant 0.000000e+00 : f32
    %19 = vector.broadcast %cst_5 : f32 to vector<8x128xf32>
    %20 = arith.select %6, %12, %19 : vector<8x128xi1>, vector<8x128xf32>
    %cst_6 = arith.constant dense<0.000000e+00> : vector<8xf32>
    %21 = vector.multi_reduction <add>, %20, %cst_6 [1] : vector<8x128xf32> to vector<8xf32>
    %22 = vector.shape_cast %21 : vector<8xf32> to vector<8x1xf32>
    %cst_7 = arith.constant 3.200000e+01 : f32
    %23 = vector.broadcast %cst_7 : f32 to vector<8x1xf32>
    %24 = arith.mulf %23, %18 : vector<8x1xf32>
    %25 = arith.subf %22, %24 : vector<8x1xf32>
    %c0_8 = arith.constant 0 : index
    %c0_9 = arith.constant 0 : index
    %26 = vector.load %arg2[%c0_8, %c0_9] : memref<8x1xi32, #tpu.memory_space<vmem>>, vector<8x1xi32>
    %27 = vector.broadcast %26 : vector<8x1xi32> to vector<8x128xi32>
    %28 = arith.cmpi eq, %4, %27 : vector<8x128xi32>
    %cst_10 = arith.constant 0.000000e+00 : f32
    %29 = vector.broadcast %cst_10 : f32 to vector<8x128xf32>
    %30 = arith.select %28, %12, %29 : vector<8x128xi1>, vector<8x128xf32>
    %cst_11 = arith.constant dense<0.000000e+00> : vector<8xf32>
    %31 = vector.multi_reduction <add>, %30, %cst_11 [1] : vector<8x128xf32> to vector<8xf32>
    %32 = vector.shape_cast %31 : vector<8xf32> to vector<8x1xf32>
    %33 = arith.subf %32, %18 : vector<8x1xf32>
    %c0_12 = arith.constant 0 : index
    %c0_13 = arith.constant 0 : index
    %34 = vector.load %arg4[%c0_12, %c0_13] : memref<1x1xf32, #tpu.memory_space<vmem>>, vector<1x1xf32>
    %35 = vector.shape_cast %33 : vector<8x1xf32> to vector<1x8x1xf32>
    %cst_14 = arith.constant dense<0.000000e+00> : vector<1xf32>
    %36 = vector.multi_reduction <add>, %35, %cst_14 [1, 2] : vector<1x8x1xf32> to vector<1xf32>
    %37 = vector.shape_cast %36 : vector<1xf32> to vector<1x1x1xf32>
    %38 = vector.extract %37[0, 0, 0] : f32 from vector<1x1x1xf32>
    %39 = vector.broadcast %38 : f32 to vector<1x1xf32>
    %40 = arith.addf %34, %39 : vector<1x1xf32>
    %c0_15 = arith.constant 0 : index
    %c0_16 = arith.constant 0 : index
    %41 = vector.load %arg4[%c0_15, %c0_16] : memref<1x1xf32, #tpu.memory_space<vmem>>, vector<1x1xf32>
    tpu.vector_store %arg4[%c0_15, %c0_16], %40 {strides = array<i32>} : memref<1x1xf32, #tpu.memory_space<vmem>>, vector<1x1xf32>,
    %c0_17 = arith.constant 0 : index
    %c0_18 = arith.constant 0 : index
    %42 = vector.load %arg5[%c0_17, %c0_18] : memref<1x1xf32, #tpu.memory_space<vmem>>, vector<1x1xf32>
    %43 = vector.shape_cast %25 : vector<8x1xf32> to vector<1x8x1xf32>
    %cst_19 = arith.constant dense<0.000000e+00> : vector<1xf32>
    %44 = vector.multi_reduction <add>, %43, %cst_19 [1, 2] : vector<1x8x1xf32> to vector<1xf32>
    %45 = vector.shape_cast %44 : vector<1xf32> to vector<1x1x1xf32>
    %46 = vector.extract %45[0, 0, 0] : f32 from vector<1x1x1xf32>
    %47 = vector.broadcast %46 : f32 to vector<1x1xf32>
    %48 = arith.addf %42, %47 : vector<1x1xf32>
    %c0_20 = arith.constant 0 : index
    %c0_21 = arith.constant 0 : index
    %49 = vector.load %arg5[%c0_20, %c0_21] : memref<1x1xf32, #tpu.memory_space<vmem>>, vector<1x1xf32>
    tpu.vector_store %arg5[%c0_20, %c0_21], %48 {strides = array<i32>} : memref<1x1xf32, #tpu.memory_space<vmem>>, vector<1x1xf32>,
    %c0_i32_22 = arith.constant 0 : i32
    %50 = arith.cmpi eq, %arg0, %c0_i32_22 : i32
    %51 = arith.extui %50 : i1 to i32
    %c0_i32_23 = arith.constant 0 : i32
    %52 = arith.cmpi ne, %51, %c0_i32_23 : i32
    scf.if %52 {
      %c0_24 = arith.constant 0 : index
      %c0_25 = arith.constant 0 : index
      %53 = vector.load %arg4[%c0_24, %c0_25] : memref<1x1xf32, #tpu.memory_space<vmem>>, vector<1x1xf32>
      %cst_26 = arith.constant 0.899999976 : f32
      %54 = vector.broadcast %cst_26 : f32 to vector<1x1xf32>
      %55 = arith.mulf %54, %53 : vector<1x1xf32>
      %c0_27 = arith.constant 0 : index
      %c0_28 = arith.constant 0 : index
      %56 = vector.load %arg5[%c0_27, %c0_28] : memref<1x1xf32, #tpu.memory_space<vmem>>, vector<1x1xf32>
      %cst_29 = arith.constant 3.125000e-03 : f32
      %57 = vector.broadcast %cst_29 : f32 to vector<1x1xf32>
      %58 = arith.mulf %57, %56 : vector<1x1xf32>
      %59 = arith.addf %55, %58 : vector<1x1xf32>
      %cst_30 = arith.constant 0.000000e+00 : f32
      %60 = vector.broadcast %cst_30 : f32 to vector<1x1xf32>
      %61 = arith.subf %60, %59 : vector<1x1xf32>
      %cst_31 = arith.constant 8.000000e+00 : f32
      %62 = vector.broadcast %cst_31 : f32 to vector<1x1xf32>
      %63 = arith.divf %61, %62 : vector<1x1xf32>
      %c0_32 = arith.constant 0 : index
      %c0_33 = arith.constant 0 : index
      %64 = vector.load %arg3[%c0_32, %c0_33] : memref<1x1xf32, #tpu.memory_space<vmem>>, vector<1x1xf32>
      tpu.vector_store %arg3[%c0_32, %c0_33], %63 {strides = array<i32>} : memref<1x1xf32, #tpu.memory_space<vmem>>, vector<1x1xf32>,
    } else {
    }
    return
  }
  func.func @transform_0(%arg0: i32) -> (i32, i32) {
    %c0_i32 = arith.constant 0 : i32
    %c0_i32_0 = arith.constant 0 : i32
    return %arg0, %c0_i32 : i32, i32
  }
  func.func @transform_1(%arg0: i32) -> (i32, i32) {
    %c0_i32 = arith.constant 0 : i32
    %c0_i32_0 = arith.constant 0 : i32
    return %arg0, %c0_i32 : i32, i32
  }
  func.func @transform_2(%arg0: i32) -> (i32, i32) {
    %c0_i32 = arith.constant 0 : i32
    %c0_i32_0 = arith.constant 0 : i32
    %c0_i32_1 = arith.constant 0 : i32
    return %c0_i32, %c0_i32_0 : i32, i32
  }
}

</mosaic_0001>

<llo_original>
// kernel: tpu_custom_call.1
$region0: #{tpu_custom_call.1}
  #allocation0 [shape = 'u32[]', space=smem, size = 0x4, offset = 0x4, fixed_abs, tag = 'smem constant byte address 0x4 - core index']
  #allocation1 [shape = 'u32[144,128]{1,0:T(1,128)}', space=vmem, size = 0x12000, scoped, tag = 'internal scratch']
  #allocation2 [shape = 'f32[1,1]{1,0:T(1,128)}', space=vmem, size = 0x200, scoped, tag = 'scratch operand']
  #allocation3 [shape = 'f32[1,1]{1,0:T(1,128)}', space=vmem, size = 0x200, scoped, tag = 'scratch operand']
  %s0 = inlined_call_operand.vmem [shape: f32[8,128], index: 0, kind: input, shape index: {}]
  %s1 = inlined_call_operand.vmem [shape: s32[8,1], index: 1, kind: input, shape index: {}]
  %s2 = inlined_call_operand.hbm [shape: f32[1,1], index: 2, kind: output, shape index: {}]
  %s3 = sld [smem:[#allocation0]]
  $region26: #{tpu_custom_call.1} parent=0
    _
  %s5 = ssub.s32 1, %s3
  %s6 = scalar_select 0, %s5, %s3
  $region1: #{tpu_custom_call.1} parent=0
    #allocation4 [shape = 'u8[512]{0}', space=vmem, size = 0x400, scoped, tag = 'output window, operand 0, single buffered']
    #allocation5 [shape = 's32[1]{0}', space=sflag, size = 0x4, scoped, tag = 'scoped memory for tpu_custom_call.1']
    %7 = vsyncpa [#allocation5], 0
    // Predicated region
    $region2: #{tpu_custom_call.1} parent=1 // pred_check
      _
    $region3: #{tpu_custom_call.1} parent=1 // pred_check_branch
      %9 = sbr.rel (0) target = $region5
    $region4: #{tpu_custom_call.1} parent=1 // pred_region
      _
    $region5: #{tpu_custom_call.1} parent=1 // pred_fallthru
      _
    // Predicated region
    $region6: #{tpu_custom_call.1} parent=1 // pred_check
      _
    $region7: #{tpu_custom_call.1} parent=1 // pred_check_branch
      %11 = sbr.rel (0) target = $region9
    $region8: #{tpu_custom_call.1} parent=1 // pred_region
      _
    $region9: #{tpu_custom_call.1} parent=1 // pred_fallthru
      _
    %p12 = scmp.eq.s32.totalorder 0, 0
    // Predicated region
    $region10: #{tpu_custom_call.1} parent=1 // pred_check
      %p13 = pneg %p12
    $region11: #{tpu_custom_call.1} parent=1 // pred_check_branch
      %15 = sbr.rel (%p13) target = $region13
    $region12: #{tpu_custom_call.1} parent=1 // pred_region
      %vm16 = vcmask 0
      %17 = vst.msk [vmem:[#allocation2] sm:$0x1] %vm16, 0.0
      %18 = vst.msk [vmem:[#allocation3] sm:$0x1] %vm16, 0.0
    $region13: #{tpu_custom_call.1} parent=1 // pred_fallthru
      _
    %v19 = vld [vmem:[%s0] sm:$0xff]
    %v20 = vlaneseq
    %v21 = vand.u32 %v20, 127
    %vm22 = vcmp.lt.s32.totalorder %v21, 32
    %v23 = vsel %vm22, %v19, -inf
    %24 = vmax.xlane.f32.xlu0 %v23
    %v25 = vpop.xlane.xlu0 %24
    %v26 = vsub.f32 %v19, %v25
    %v27 = vmul.f32 %v26, 1.442695
    %v28 = vpow.pop %v27
    %v29 = vsel %vm22, %v28, 0.0
    %30 = vadd.xlane.f32.xlu0 %v29
    %v31 = vpop.xlane.xlu0 %30
    %v32 = vlog2.pop %v31
    %v33 = vmul.f32 %v32, 0.6931472
    %v34 = vsel %vm22, %v26, 0.0
    %35 = vadd.xlane.f32.xlu0 %v34
    %v36 = vpop.xlane.xlu0 %35
    %v37 = vmul.f32 %v33, 32.0
    %v38 = vsub.f32 %v36, %v37
    %v39 = vld [vmem:[%s1] sm:$0xff]
    %40 = vset.pattern.permute.xlu0 0
    %41 = vperm.xlu0 %40, %v39
    %v42 = vpop.permute.xlu0 %41
    %vm43 = vcmp.eq.s32.totalorder %v21, %v42
    %v44 = vsel %vm43, %v26, 0.0
    %45 = vadd.xlane.f32.xlu0 %v44
    %v46 = vpop.xlane.xlu0 %45
    %v47 = vsub.f32 %v46, %v33
    %v48 = vld [vmem:[#allocation2] sm:$0x1]
    %vm49 = vcmask 7168
    %v50 = vsel %vm49, %v47, 0.0
    %51 = vadd.xlane.f32.xlu0 %v50
    %v52 = vpop.xlane.xlu0 %51
    %v53 = vrot.slane %v52, 4
    %v54 = vadd.f32 %v52, %v53
    %v55 = vrot.slane %v54, 2
    %v56 = vadd.f32 %v54, %v55
    %v57 = vrot.slane %v56, 1
    %v58 = vadd.f32 %v56, %v57
    %s59 = vtos %v58
    %v60 = vstv %s59
    %v61 = vadd.f32 %v48, %v60
    %vm62 = vcmask 0
    %63 = vst.msk [vmem:[#allocation2] sm:$0x1] %vm62, %v61
    %v64 = vld [vmem:[#allocation3] sm:$0x1]
    %v65 = vsel %vm49, %v38, 0.0
    %66 = vadd.xlane.f32.xlu0 %v65
    %v67 = vpop.xlane.xlu0 %66
    %v68 = vrot.slane %v67, 4
    %v69 = vadd.f32 %v67, %v68
    %v70 = vrot.slane %v69, 2
    %v71 = vadd.f32 %v69, %v70
    %v72 = vrot.slane %v71, 1
    %v73 = vadd.f32 %v71, %v72
    %s74 = vtos %v73
    %v75 = vstv %s74
    %v76 = vadd.f32 %v64, %v75
    %77 = vst.msk [vmem:[#allocation3] sm:$0x1] %vm62, %v76
    // Predicated region
    $region14: #{tpu_custom_call.1} parent=1 // pred_check
      %p78 = pneg %p12
    $region15: #{tpu_custom_call.1} parent=1 // pred_check_branch
      %80 = sbr.rel (%p78) target = $region17
    $region16: #{tpu_custom_call.1} parent=1 // pred_region
      %v81 = vld [vmem:[#allocation2] sm:$0x1]
      %v82 = vmul.f32 %v81, 0.9
      %v83 = vld [vmem:[#allocation3] sm:$0x1]
      %v84 = vmul.f32 %v83, 0.003125
      %v85 = vadd.f32 %v82, %v84
      %v86 = vsub.f32 0.0, %v85
      %v87 = vrcp.pop 8.0
      %v88 = vmul.f32 %v86, %v87
      %89 = vst.msk [vmem:[#allocation4] sm:$0x1] %vm62, %v88
    $region17: #{tpu_custom_call.1} parent=1 // pred_fallthru
      _
    // Predicated region
    $region18: #{tpu_custom_call.1} parent=1 // pred_check
      _
    $region19: #{tpu_custom_call.1} parent=1 // pred_check_branch
      %91 = sbr.rel (0) target = $region21
    $region20: #{tpu_custom_call.1} parent=1 // pred_region
      %s93 = ssub.s32 16, 16
      %94 = vsyncadd [#allocation5], %s93
      %s96 = sshll.u32 [#allocation4], 4
      %s97 = int_to_ptr.vmem [resolvable:$true] %s96
      %99 = dma.vmem_to_hbm [thread:$0]  %s97, 16, %s2, [#allocation5]
    $region21: #{tpu_custom_call.1} parent=1 // pred_fallthru
      _
    // Predicated region
    $region22: #{tpu_custom_call.1} parent=1 // pred_check
      _
    $region23: #{tpu_custom_call.1} parent=1 // pred_check_branch
      %101 = sbr.rel (0) target = $region25
    $region24: #{tpu_custom_call.1} parent=1 // pred_region
      %102 = dma.done [#allocation5], 16
    $region25: #{tpu_custom_call.1} parent=1 // pred_fallthru
      _
    %103 = vsyncpa [#allocation5], 1

</llo_original>
